<compile_context>
chip_gen: v7x
topology: tpu7x:2x2x1
jax: 0.10.0
libtpu: 0.0.40
codegen_flags: <defaults>
</compile_context>

<pallas_src>
import functools

import jax
import jax.numpy as jnp
from jax.experimental import pallas as pl
from jax.experimental.pallas import tpu as pltpu


def make_positional_encoding_table(max_posns, d_model, dtype=jnp.float32):
    """Mirrors the PyTorch buffer: pe[:, 0::2]=sin(pos/10000^e), pe[:, 1::2]=cos(...)."""
    pos = jnp.arange(max_posns, dtype=jnp.float32)[:, None]            # [P, 1]
    expn = jnp.arange(0, d_model, 2, dtype=jnp.float32) / d_model      # [d_model//2]
    angles = pos / jnp.power(10000.0, expn)                            # [P, d_model//2]
    pe = jnp.zeros((max_posns, d_model), jnp.float32)
    pe = pe.at[:, 0::2].set(jnp.sin(angles))
    pe = pe.at[:, 1::2].set(jnp.cos(angles))
    return pe[None].astype(dtype)                                      # [1, P, d_model]


def _pos_enc_kernel(x_ref, pe_ref, o_ref):
    # x_ref / o_ref: (1, tn, d_model) token tile; pe_ref: (1, tn, d_model) f32 table tile.
    o_ref[...] = (x_ref[...].astype(jnp.float32) + pe_ref[...]).astype(o_ref.dtype)


def _round_up(a, m):
    return ((a + m - 1) // m) * m


@functools.partial(jax.jit, static_argnames=("tn",))
def positional_encoding(x, pe, *, tn=256):
    """x: [nb, nw, d_model]; pe: [1, max_posns, d_model] (f32 sin/cos table).

    Returns x + pe[:, :nw]  (dropout is identity / eval mode).
    """
    nb, nw, d_model = x.shape
    assert pe.shape[1] >= nw, "sequence longer than positional-encoding table"

    # Token (sublane) tile: as large as reasonable, multiple of 8 for (8,128) layout.
    tn_eff = min(_round_up(tn, 8), _round_up(nw, 8))
    nw_pad = _round_up(nw, tn_eff)

    pe_used = pe[:, :nw].astype(jnp.float32)
    if nw_pad != nw:
        # Pad ragged sequence lengths; padded rows are sliced off after the call.
        x_in = jnp.pad(x, ((0, 0), (0, nw_pad - nw), (0, 0)))
        pe_used = jnp.pad(pe_used, ((0, 0), (0, nw_pad - nw), (0, 0)))
    else:
        x_in = x

    num_tiles = nw_pad // tn_eff
    itemsize = jnp.dtype(x.dtype).itemsize

    cost = pl.CostEstimate(
        flops=nb * nw_pad * d_model,                     # one add per element
        transcendentals=0,
        bytes_accessed=(x_in.size * itemsize             # read x
                        + pe_used.size * 4               # read pe
                        + x_in.size * itemsize),         # write out
    )

    out = pl.pallas_call(
        _pos_enc_kernel,
        out_shape=jax.ShapeDtypeStruct((nb, nw_pad, d_model), x.dtype),
        grid_spec=pltpu.PrefetchScalarGridSpec(
            num_scalar_prefetch=0,
            grid=(nb, num_tiles),
            in_specs=[
                pl.BlockSpec((1, tn_eff, d_model), lambda b, j: (b, j, 0)),  # x tile
                pl.BlockSpec((1, tn_eff, d_model), lambda b, j: (0, j, 0)),  # pe tile
            ],
            out_specs=pl.BlockSpec((1, tn_eff, d_model), lambda b, j: (b, j, 0)),
        ),
        compiler_params=pltpu.CompilerParams(
            dimension_semantics=("parallel", "parallel")),
        cost_estimate=cost,
    )(x_in, pe_used)

    if nw_pad != nw:
        out = out[:, :nw]
    return out


def _reference(x, pe):
    return x + pe[:, :x.shape[1]]


if __name__ == "__main__":
    key = jax.random.PRNGKey(0)

    # Small, lane-dense demo shapes: [nb, nw, d_model] with d_model a multiple of 128.
    nb, nw, d_model, max_posns = 2, 16, 128, 64
    x = jax.random.normal(key, (nb, nw, d_model), jnp.float32)
    pe = make_positional_encoding_table(max_posns, d_model)

    out = positional_encoding(x, pe, tn=256)
    out = jax.block_until_ready(out)

    ref = _reference(x, pe)
    assert out.shape == (nb, nw, d_model)
    assert jnp.allclose(out, ref, atol=1e-6, rtol=1e-6), "mismatch vs reference"

    print("KERNEL_OK")
</pallas_src>

<mosaic_0001>
module attributes {stable_mosaic.version = 11 : i64} {
  func.func @_pos_enc_kernel(%arg0: i32, %arg1: i32, %arg2: memref<1x16x128xf32, #tpu.memory_space<vmem>>, %arg3: memref<1x16x128xf32, #tpu.memory_space<vmem>>, %arg4: memref<1x16x128xf32, #tpu.memory_space<vmem>>) attributes {dimension_semantics = [#tpu.dimension_semantics<parallel>, #tpu.dimension_semantics<parallel>], iteration_bounds = array<i64: 2, 1>, scalar_prefetch = 0 : i64, scratch_operands = 0 : i64, tpu.core_type = #tpu.core_type<tc>, window_params = [{transform_indices = @transform_0, window_bounds = array<i64: 1, 16, 128>}, {transform_indices = @transform_1, window_bounds = array<i64: 1, 16, 128>}, {transform_indices = @transform_2, window_bounds = array<i64: 1, 16, 128>}]} {
    %c0 = arith.constant 0 : index
    %c0_0 = arith.constant 0 : index
    %c0_1 = arith.constant 0 : index
    %0 = vector.load %arg2[%c0, %c0_0, %c0_1] : memref<1x16x128xf32, #tpu.memory_space<vmem>>, vector<1x16x128xf32>
    %c0_2 = arith.constant 0 : index
    %c0_3 = arith.constant 0 : index
    %c0_4 = arith.constant 0 : index
    %1 = vector.load %arg3[%c0_2, %c0_3, %c0_4] : memref<1x16x128xf32, #tpu.memory_space<vmem>>, vector<1x16x128xf32>
    %2 = arith.addf %0, %1 : vector<1x16x128xf32>
    %c0_5 = arith.constant 0 : index
    %c0_6 = arith.constant 0 : index
    %c0_7 = arith.constant 0 : index
    %3 = vector.load %arg4[%c0_5, %c0_6, %c0_7] : memref<1x16x128xf32, #tpu.memory_space<vmem>>, vector<1x16x128xf32>
    tpu.vector_store %arg4[%c0_5, %c0_6, %c0_7], %2 {strides = array<i32>} : memref<1x16x128xf32, #tpu.memory_space<vmem>>, vector<1x16x128xf32>,
    return
  }
  func.func @transform_0(%arg0: i32, %arg1: i32) -> (i32, i32, i32) {
    %c0_i32 = arith.constant 0 : i32
    %c0_i32_0 = arith.constant 0 : i32
    return %arg0, %arg1, %c0_i32 : i32, i32, i32
  }
  func.func @transform_1(%arg0: i32, %arg1: i32) -> (i32, i32, i32) {
    %c0_i32 = arith.constant 0 : i32
    %c0_i32_0 = arith.constant 0 : i32
    %c0_i32_1 = arith.constant 0 : i32
    return %c0_i32, %arg1, %c0_i32_0 : i32, i32, i32
  }
  func.func @transform_2(%arg0: i32, %arg1: i32) -> (i32, i32, i32) {
    %c0_i32 = arith.constant 0 : i32
    %c0_i32_0 = arith.constant 0 : i32
    return %arg0, %arg1, %c0_i32 : i32, i32, i32
  }
}

</mosaic_0001>

<llo_original>
// kernel: positional_encoding.1
$region0: #{positional_encoding.1}
  #allocation0 [shape = 'u32[]', space=smem, size = 0x4, offset = 0x4, fixed_abs, tag = 'smem constant byte address 0x4 - core index']
  #allocation1 [shape = 'u32[144,128]{1,0:T(1,128)}', space=vmem, size = 0x12000, scoped, tag = 'internal scratch']
  %s0 = inlined_call_operand.hbm [shape: f32[2,16,128], index: 0, kind: input, shape index: {}]
  %s1 = inlined_call_operand.vmem [shape: f32[1,16,128], index: 1, kind: input, shape index: {}]
  %s2 = inlined_call_operand.hbm [shape: f32[2,16,128], index: 2, kind: output, shape index: {}]
  %s3 = sld [smem:[#allocation0]]
  $region45: #{positional_encoding.1} parent=0
    _
  %s5 = ssub.s32 1, %s3
  %s6 = scalar_select 0, %s5, %s3
  $region1: #{positional_encoding.1} parent=0
    #allocation2 [shape = 'u8[16384]{0}', space=vmem, size = 0x4000, scoped, tag = 'input window, operand 0']
    #allocation3 [shape = 's32[2]{0}', space=sflag, size = 0x8, scoped, tag = 'scoped memory for positional_encoding.1']
    #allocation4 [shape = 's32[2]{0}', space=sflag, size = 0x8, scoped, tag = 'scoped memory for positional_encoding.1']
    #allocation5 [shape = 'u8[16384]{0}', space=vmem, size = 0x4000, scoped, tag = 'output window, operand 0']
    %7 = vsyncpa [#allocation3], 0
    %s8 = scalar_lea.sflag [#allocation3], 1
    %9 = vsyncpa %s8, 0
    %10 = vsyncpa [#allocation4], 0
    %s11 = scalar_lea.sflag [#allocation4], 1
    %12 = vsyncpa %s11, 0
    loop: start=0, step=1, limit=4
    $region2: #{positional_encoding.1} parent=1 // loop_pre_header
      _
    $region3: #{positional_encoding.1} parent=1 // loop_header
      %s14 = sphi 0, %s18
      %p15 = scmp.ge.s32.totalorder %s14, 4
      %s21 = sphi 0, %s33
      %s22 = sphi 0, %s29
      %s23 = sphi 0, %s21
      %s24 = sphi 0, %s22
      %s25 = sphi 0, %s23
      %s26 = sphi 0, %s24
      %s38 = sphi 0, %s40
      %s41 = sphi 0, %s38
      %s42 = sphi 0, %s41
      %s58 = sphi 0, %s42
      %s64 = sphi 0, %s66
      %s67 = sphi 0, %s64
      %s68 = sphi 0, %s67
      %s84 = sphi 0, %s68
      %s92 = sphi 0, %s94
      %s95 = sphi 0, %s92
      %s96 = sphi 0, %s95
      %s112 = sphi 0, %s96
    $region4: #{positional_encoding.1} parent=1 // loop_header_branch
      %17 = sbr.rel (%p15) target = $region8
    $region5: #{positional_encoding.1} parent=1 // loop_body
      %s19 = ssub.s32 %s14, 1
      %s20 = ssub.s32 %s14, 2
      %s27 = sadd.s32 1, %s22
      %p28 = scmp.ge.s32.totalorder %s27, 1
      %s29 = scalar_select %p28, 0, %s27
      %s30 = sadd.s32 1, %s21
      %s31 = scalar_select %p28, %s30, %s21
      %p32 = scmp.ge.s32.totalorder %s31, 2
      %s33 = scalar_select %p32, 0, %s31
      %s34 = ssub.s32 %s21, %s33
      %s35 = ssub.s32 %s22, %s29
      %s36 = sor.u32 %s34, %s35
      %p37 = scmp.eq.s32.totalorder %s36, 0
      %s39 = sadd.s32 %s38, 1
      %s40 = scalar_select %p37, %s38, %s39
      %p43 = pneg %p37
      %p44 = scmp.eq.s32.totalorder %s14, 1
      %p45 = por %p43, %p44
      %p46 = scmp.ne.s32.totalorder %s38, %s41
      %p47 = scmp.eq.s32.totalorder %s14, 0
      %p48 = por %p46, %p47
      %p49 = scmp.ne.s32.totalorder %s38, %s41
      %p50 = scmp.eq.s32.totalorder %s19, 1
      %p51 = por %p49, %p50
      %p52 = scmp.ne.s32.totalorder %s41, %s42
      %p53 = scmp.eq.s32.totalorder %s19, 0
      %p54 = por %p52, %p53
      %p55 = scmp.ne.s32.totalorder %s41, %s42
      %p56 = scmp.eq.s32.totalorder %s20, 1
      %p57 = por %p55, %p56
      %p59 = scmp.ne.s32.totalorder %s42, %s58
      %p60 = scmp.eq.s32.totalorder %s20, 0
      %p61 = por %p59, %p60
      %s62 = ssub.s32 %s22, %s29
      %p63 = scmp.eq.s32.totalorder %s62, 0
      %s65 = sadd.s32 %s64, 1
      %s66 = scalar_select %p63, %s64, %s65
      %p69 = pneg %p63
      %p70 = scmp.eq.s32.totalorder %s14, 1
      %p71 = por %p69, %p70
      %p72 = scmp.ne.s32.totalorder %s64, %s67
      %p73 = scmp.eq.s32.totalorder %s14, 0
      %p74 = por %p72, %p73
      %p75 = scmp.ne.s32.totalorder %s64, %s67
      %p76 = scmp.eq.s32.totalorder %s19, 1
      %p77 = por %p75, %p76
      %p78 = scmp.ne.s32.totalorder %s67, %s68
      %p79 = scmp.eq.s32.totalorder %s19, 0
      %p80 = por %p78, %p79
      %p81 = scmp.ne.s32.totalorder %s67, %s68
      %p82 = scmp.eq.s32.totalorder %s20, 1
      %p83 = por %p81, %p82
      %p85 = scmp.ne.s32.totalorder %s68, %s84
      %p86 = scmp.eq.s32.totalorder %s20, 0
      %p87 = por %p85, %p86
      %s88 = ssub.s32 %s21, %s33
      %s89 = ssub.s32 %s22, %s29
      %s90 = sor.u32 %s88, %s89
      %p91 = scmp.eq.s32.totalorder %s90, 0
      %s93 = sadd.s32 %s92, 1
      %s94 = scalar_select %p91, %s92, %s93
      %p97 = pneg %p91
      %p98 = scmp.eq.s32.totalorder %s14, 1
      %p99 = por %p97, %p98
      %p100 = scmp.ne.s32.totalorder %s92, %s95
      %p101 = scmp.eq.s32.totalorder %s14, 0
      %p102 = por %p100, %p101
      %p103 = scmp.ne.s32.totalorder %s92, %s95
      %p104 = scmp.eq.s32.totalorder %s19, 1
      %p105 = por %p103, %p104
      %p106 = scmp.ne.s32.totalorder %s95, %s96
      %p107 = scmp.eq.s32.totalorder %s19, 0
      %p108 = por %p106, %p107
      %p109 = scmp.ne.s32.totalorder %s95, %s96
      %p110 = scmp.eq.s32.totalorder %s20, 1
      %p111 = por %p109, %p110
      %p113 = scmp.ne.s32.totalorder %s96, %s112
      %p114 = scmp.eq.s32.totalorder %s20, 0
      %p115 = por %p113, %p114
      %p116 = scmp.le.s32.totalorder 1, %s14
      %p117 = scmp.lt.s32.totalorder %s14, 3
      %p118 = pnand %p116, %p117
      %p119 = pneg %p118
      // Predicated region
      $region9: #{positional_encoding.1} parent=5 // pred_check
        _
      $region10: #{positional_encoding.1} parent=5 // pred_check_branch
        %121 = sbr.rel (%p118) target = $region12
      $region11: #{positional_encoding.1} parent=5 // pred_region
        %s122 = ssub.s32 %s14, 1
        // Predicated region
        $region13: #{positional_encoding.1} parent=11 // pred_check
          %p123 = pneg %p80
        $region14: #{positional_encoding.1} parent=11 // pred_check_branch
          %125 = sbr.rel (%p123) target = $region16
        $region15: #{positional_encoding.1} parent=11 // pred_region
          %s126 = smul.u32 2, %s24
          %p127 = scmp.lt.s32.totalorder %s126, 1
          %s128 = scalar_select %p127, %s126, 1
          %s129 = smul.addr %s128, 8
          %s130 = scalar_lea.vmem %s1, %s129
          %s131 = smul.u32 2, %s24
        $region16: #{positional_encoding.1} parent=11 // pred_fallthru
          _
      $region12: #{positional_encoding.1} parent=5 // pred_fallthru
        _
      %p132 = scmp.lt.s32.totalorder %s14, 2
      // Predicated region
      $region17: #{positional_encoding.1} parent=5 // pred_check
        %p133 = pneg %p132
      $region18: #{positional_encoding.1} parent=5 // pred_check_branch
        %135 = sbr.rel (%p133) target = $region20
      $region19: #{positional_encoding.1} parent=5 // pred_region
        // Predicated region
        $region21: #{positional_encoding.1} parent=19 // pred_check
          %p136 = pneg %p48
        $region22: #{positional_encoding.1} parent=19 // pred_check_branch
          %138 = sbr.rel (%p136) target = $region24
        $region23: #{positional_encoding.1} parent=19 // pred_region
          %s139 = sand.u32 %s38, 1
          %s140 = scalar_lea.sflag [#allocation3], %s139
          %s141 = sand.u32 %s38, 1
          %s142 = smul.addr %s141, 16
          %s143 = scalar_lea.vmem [#allocation2], %s142
          %s144 = smul.u32 2, %s22
          %s146 = ssub.s32 256, 256
          %147 = vsyncadd %s140, %s146
          %s148 = smul.addr %s21, 2
          %s149 = sadd.s32 %s144, %s148
          %s150 = smul.addr %s149, 128
          %s151 = scalar_lea.hbm %s0, %s150
          %s152 = sshll.u32 %s143, 4
          %s153 = int_to_ptr.vmem [resolvable:$true] %s152
          %158 = dma.hbm_to_vmem [thread:$0]  %s151, 256, %s153, %s140, 128, 128, 8
        $region24: #{positional_encoding.1} parent=19 // pred_fallthru
          _
      $region20: #{positional_encoding.1} parent=5 // pred_fallthru
        _
      %p159 = scmp.le.s32.totalorder 1, %s14
      %p160 = scmp.lt.s32.totalorder %s14, 3
      %p161 = pnand %p159, %p160
      %p162 = pneg %p161
      // Predicated region
      $region25: #{positional_encoding.1} parent=5 // pred_check
        _
      $region26: #{positional_encoding.1} parent=5 // pred_check_branch
        %164 = sbr.rel (%p161) target = $region28
      $region27: #{positional_encoding.1} parent=5 // pred_region
        %s165 = ssub.s32 %s14, 1
        %s166 = sand.u32 %s41, 1
        %s167 = scalar_lea.sflag [#allocation3], %s166
        %s168 = sand.u32 %s41, 1
        %s169 = smul.addr %s168, 16
        %s170 = scalar_lea.vmem [#allocation2], %s169
        // Predicated region
        $region29: #{positional_encoding.1} parent=27 // pred_check
          %p171 = pneg %p54
        $region30: #{positional_encoding.1} parent=27 // pred_check_branch
          %173 = sbr.rel (%p171) target = $region32
        $region31: #{positional_encoding.1} parent=27 // pred_region
          %174 = dma.done %s167, 256
        $region32: #{positional_encoding.1} parent=27 // pred_fallthru
          _
        %s175 = sand.u32 %s41, 1
        %s176 = scalar_lea.sflag [#allocation3], %s175
        %s177 = sand.u32 %s41, 1
        %s178 = smul.addr %s177, 16
        %s179 = scalar_lea.vmem [#allocation2], %s178
        %p180 = pneg %p54
        %p181 = pneg %p51
        %s182 = smul.u32 2, %s24
        %p183 = scmp.lt.s32.totalorder %s182, 1
        %s184 = scalar_select %p183, %s182, 1
        %s185 = smul.addr %s184, 8
        %s186 = scalar_lea.vmem %s1, %s185
        %p187 = pneg %p80
        %p188 = pneg %p77
        %p189 = pneg %p108
        %p190 = pneg %p105
        %s191 = sand.u32 %s95, 1
        %s192 = scalar_lea.sflag [#allocation4], %s191
        %s193 = sand.u32 %s95, 1
        %s194 = smul.addr %s193, 16
        %s195 = scalar_lea.vmem [#allocation5], %s194
        %s196 = smul.u32 2, %s24
        %s197 = smul.u32 2, %s24
        %p198 = scmp.lt.s32.totalorder %s197, 1
        %s199 = scalar_select %p198, %s197, 1
        %s200 = smul.addr %s199, 8
        %s201 = scalar_lea.vmem %s1, %s200
        %s202 = smul.u32 2, %s24
        %s203 = smul.u32 2, %s24
        %v204 = vld [vmem:[%s170] sm:$0xff]
        %v205 = vld [vmem:[%s170 + $0x8] sm:$0xff]
        %v206 = vld [vmem:[%s201] sm:$0xff]
        %v207 = vld [vmem:[%s201 + $0x8] sm:$0xff]
        %v208 = vadd.f32 %v204, %v206
        %v209 = vadd.f32 %v205, %v207
        %210 = vst [vmem:[%s195] sm:$0xff] %v208
        %211 = vst [vmem:[%s195 + $0x8] sm:$0xff] %v209
        %s212 = sand.u32 %s95, 1
        %s213 = scalar_lea.sflag [#allocation4], %s212
        %s214 = sand.u32 %s95, 1
        %s215 = smul.addr %s214, 16
        %s216 = scalar_lea.vmem [#allocation5], %s215
        // Predicated region
        $region33: #{positional_encoding.1} parent=27 // pred_check
          %p217 = pneg %p105
        $region34: #{positional_encoding.1} parent=27 // pred_check_branch
          %219 = sbr.rel (%p217) target = $region36
        $region35: #{positional_encoding.1} parent=27 // pred_region
          %s220 = smul.u32 2, %s24
          %s222 = ssub.s32 256, 256
          %223 = vsyncadd %s213, %s222
          %s224 = smul.addr %s23, 2
          %s225 = sadd.s32 %s220, %s224
          %s226 = smul.addr %s225, 128
          %s227 = scalar_lea.hbm %s2, %s226
          %s228 = sshll.u32 %s216, 4
          %s229 = int_to_ptr.vmem [resolvable:$true] %s228
          %234 = dma.vmem_to_hbm [thread:$0]  %s229, 256, %s227, %s213, 128, 128, 8
        $region36: #{positional_encoding.1} parent=27 // pred_fallthru
          _
      $region28: #{positional_encoding.1} parent=5 // pred_fallthru
        _
      %p235 = scmp.le.s32.totalorder 2, %s14
      // Predicated region
      $region37: #{positional_encoding.1} parent=5 // pred_check
        %p236 = pneg %p235
      $region38: #{positional_encoding.1} parent=5 // pred_check_branch
        %238 = sbr.rel (%p236) target = $region40
      $region39: #{positional_encoding.1} parent=5 // pred_region
        %s239 = ssub.s32 %s14, 2
        // Predicated region
        $region41: #{positional_encoding.1} parent=39 // pred_check
          %p240 = pneg %p111
        $region42: #{positional_encoding.1} parent=39 // pred_check_branch
          %242 = sbr.rel (%p240) target = $region44
        $region43: #{positional_encoding.1} parent=39 // pred_region
          %s243 = sand.u32 %s96, 1
          %s244 = scalar_lea.sflag [#allocation4], %s243
          %s245 = sand.u32 %s96, 1
          %s246 = smul.addr %s245, 16
          %s247 = scalar_lea.vmem [#allocation5], %s246
          %248 = dma.done %s244, 256
        $region44: #{positional_encoding.1} parent=39 // pred_fallthru
          _
      $region40: #{positional_encoding.1} parent=5 // pred_fallthru
        _
    $region6: #{positional_encoding.1} parent=1 // loop_footer
      %s18 = sadd.s32 1, %s14
    $region7: #{positional_encoding.1} parent=1 // loop_footer_branch
      %13 = sbr.rel target = $region3
    $region8: #{positional_encoding.1} parent=1 // loop_exit
      _
    %249 = vsyncpa [#allocation3], 1
    %s250 = scalar_lea.sflag [#allocation3], 1
    %251 = vsyncpa %s250, 1
    %252 = vsyncpa [#allocation4], 1
    %s253 = scalar_lea.sflag [#allocation4], 1
    %254 = vsyncpa %s253, 1

</llo_original>
